<compile_context>
chip_gen: v6e
topology: v6e:2x2x1
jax: 0.10.0
libtpu: 0.0.40
codegen_flags: <defaults>
</compile_context>

<pallas_src>
import functools

import jax
import jax.numpy as jnp
from jax.experimental import pallas as pl
from jax.experimental.pallas import tpu as pltpu


CONCAT2D_AXIS = 1  # layer_conf.concat2D_axis

# Below this many output elements the pallas_call launch + per-step overhead
# dominates the copy; XLA's native concat is optimal for such sizes.
_MIN_PALLAS_ELEMS = 64 * 1024


def _concat2d_dma_kernel(offsets, sizes, *refs):
    """HBM->HBM concat: one async DMA per input into its output column slice.

    refs = (x0_hbm, ..., x{N-1}_hbm, out_hbm, dma_sems).
    offsets/sizes are static Python ints baked in at trace time, so every
    destination slice is a static strided DMA descriptor.
    """
    n = len(sizes)
    in_refs = refs[:n]
    out_ref = refs[n]
    sem = refs[n + 1]

    copies = []
    for i, (in_ref, off, sz) in enumerate(zip(in_refs, offsets, sizes)):
        cp = pltpu.make_async_copy(in_ref, out_ref.at[:, off:off + sz], sem.at[i])
        cp.start()            # issue every DMA first so they all overlap
        copies.append(cp)
    for cp in copies:         # then drain all completion semaphores
        cp.wait()


def concat2d(strings, *, force_pallas=False):
    """Concatenate a list of [batch, dim_i] arrays along axis 1."""
    if CONCAT2D_AXIS != 1:
        raise NotImplementedError(
            "Pallas Concat2D kernel only supports concat2D_axis == 1")
    if not strings:
        raise ValueError("concat2d needs at least one input")

    batch = strings[0].shape[0]
    dtype = strings[0].dtype
    for i, s in enumerate(strings):
        if s.ndim != 2:
            raise ValueError(f"input {i} must be rank-2 [batch, dim], got {s.shape}")
        if s.shape[0] != batch:
            raise ValueError(f"input {i} batch {s.shape[0]} != {batch}")
        if s.dtype != dtype:
            raise ValueError(
                f"input {i} dtype {s.dtype} != {dtype}; refusing implicit cast")

    sizes = tuple(int(s.shape[1]) for s in strings)
    offsets = []
    acc = 0
    for sz in sizes:
        offsets.append(acc)
        acc += sz
    offsets = tuple(offsets)
    out_dim = acc

    # Tiny shapes: skip Pallas entirely (XLA concat is already a single DMA).
    if not force_pallas and batch * out_dim < _MIN_PALLAS_ELEMS:
        return jnp.concatenate(strings, axis=CONCAT2D_AXIS)

    kernel = functools.partial(_concat2d_dma_kernel, offsets, sizes)

    return pl.pallas_call(
        kernel,
        out_shape=jax.ShapeDtypeStruct((batch, out_dim), dtype),
        in_specs=[pl.BlockSpec(memory_space=pl.ANY) for _ in strings],
        out_specs=pl.BlockSpec(memory_space=pl.ANY),
        scratch_shapes=[pltpu.SemaphoreType.DMA((len(strings),))],
    )(*strings)


def concat2d_forward(*args, force_pallas=False):
    """Mirror of Concat2D.forward: (*[string, string_len] pairs) ->
    (concatenated strings, first string_len)."""
    strings = [a for i, a in enumerate(args) if i % 2 == 0]
    out = concat2d(strings, force_pallas=force_pallas)
    return out, args[1]


if __name__ == "__main__":
    key = jax.random.PRNGKey(0)
    k0, k1, k2 = jax.random.split(key, 3)

    # Small but lane-aligned shapes: feature dims are multiples of 128 so every
    # output column slice starts on a 128-lane boundary (perf-review guidance).
    batch = 8
    d0, d1, d2 = 128, 256, 128

    string0 = jax.random.normal(k0, (batch, d0), dtype=jnp.float32)
    string1 = jax.random.normal(k1, (batch, d1), dtype=jnp.float32)
    string2 = jax.random.normal(k2, (batch, d2), dtype=jnp.float32)

    len0 = jnp.full((batch,), 8, dtype=jnp.int32)
    len1 = jnp.full((batch,), 8, dtype=jnp.int32)
    len2 = jnp.full((batch,), 8, dtype=jnp.int32)

    # Exercise the Pallas DMA kernel (force past the small-size gate).
    out, out_len = concat2d_forward(
        string0, len0, string1, len1, string2, len2, force_pallas=True)
    out = jax.block_until_ready(out)
    out_len = jax.block_until_ready(out_len)

    ref = jnp.concatenate([string0, string1, string2], axis=CONCAT2D_AXIS)
    assert out.shape == (batch, d0 + d1 + d2), out.shape
    assert jnp.array_equal(out, ref), "mismatch vs reference concat"
    assert jnp.array_equal(out_len, len0), "length pass-through mismatch"

    # Tiny-shape path (gated to jnp.concatenate) must give identical results.
    tiny0 = string0[:2, :32]
    tiny1 = string1[:2, :64]
    tiny_out, tiny_len = concat2d_forward(tiny0, len0[:2], tiny1, len1[:2])
    tiny_out = jax.block_until_ready(tiny_out)
    assert jnp.array_equal(
        tiny_out, jnp.concatenate([tiny0, tiny1], axis=CONCAT2D_AXIS))
    assert jnp.array_equal(tiny_len, len0[:2])

    print("KERNEL_OK")
</pallas_src>

<mosaic_0001>
module attributes {stable_mosaic.version = 11 : i64} {
  func.func @_concat2d_dma_kernel(%arg0: memref<8x128xf32, #tpu.memory_space<any>>, %arg1: memref<8x256xf32, #tpu.memory_space<any>>, %arg2: memref<8x128xf32, #tpu.memory_space<any>>, %arg3: memref<8x512xf32, #tpu.memory_space<any>>, %arg4: memref<3x!tpu.dma_semaphore, #tpu.memory_space<semaphore_mem>>) attributes {dimension_semantics = [], scalar_prefetch = 0 : i64, scratch_operands = 1 : i64, tpu.core_type = #tpu.core_type<tc>} {
    %c0_i32 = arith.constant 0 : i32
    %c0_i32_0 = arith.constant 0 : i32
    %c0_i32_1 = arith.constant 0 : i32
    %0 = tpu.memref_slice %arg3[%c0_i32_0, %c0_i32_1] : memref<8x512xf32, #tpu.memory_space<any>> -> memref<8x128xf32, #tpu.memory_space<any>>
    %1 = tpu.memref_slice %arg4[%c0_i32] : memref<3x!tpu.dma_semaphore, #tpu.memory_space<semaphore_mem>> -> memref<1x!tpu.dma_semaphore, #tpu.memory_space<semaphore_mem>>
    %2 = tpu.memref_squeeze %1 : memref<1x!tpu.dma_semaphore, #tpu.memory_space<semaphore_mem>> -> memref<!tpu.dma_semaphore, #tpu.memory_space<semaphore_mem>>
    tpu.enqueue_dma source(%arg0 : memref<8x128xf32, #tpu.memory_space<any>>) target(%0 : memref<8x128xf32, #tpu.memory_space<any>>) target_semaphore(%2 : memref<!tpu.dma_semaphore, #tpu.memory_space<semaphore_mem>>)
    %c1_i32 = arith.constant 1 : i32
    %c0_i32_2 = arith.constant 0 : i32
    %c128_i32 = arith.constant 128 : i32
    %3 = tpu.memref_slice %arg3[%c0_i32_2, %c128_i32] : memref<8x512xf32, #tpu.memory_space<any>> -> memref<8x256xf32, #tpu.memory_space<any>>
    %4 = tpu.memref_slice %arg4[%c1_i32] : memref<3x!tpu.dma_semaphore, #tpu.memory_space<semaphore_mem>> -> memref<1x!tpu.dma_semaphore, #tpu.memory_space<semaphore_mem>>
    %5 = tpu.memref_squeeze %4 : memref<1x!tpu.dma_semaphore, #tpu.memory_space<semaphore_mem>> -> memref<!tpu.dma_semaphore, #tpu.memory_space<semaphore_mem>>
    tpu.enqueue_dma source(%arg1 : memref<8x256xf32, #tpu.memory_space<any>>) target(%3 : memref<8x256xf32, #tpu.memory_space<any>>) target_semaphore(%5 : memref<!tpu.dma_semaphore, #tpu.memory_space<semaphore_mem>>)
    %c2_i32 = arith.constant 2 : i32
    %c0_i32_3 = arith.constant 0 : i32
    %c384_i32 = arith.constant 384 : i32
    %6 = tpu.memref_slice %arg3[%c0_i32_3, %c384_i32] : memref<8x512xf32, #tpu.memory_space<any>> -> memref<8x128xf32, #tpu.memory_space<any>>
    %7 = tpu.memref_slice %arg4[%c2_i32] : memref<3x!tpu.dma_semaphore, #tpu.memory_space<semaphore_mem>> -> memref<1x!tpu.dma_semaphore, #tpu.memory_space<semaphore_mem>>
    %8 = tpu.memref_squeeze %7 : memref<1x!tpu.dma_semaphore, #tpu.memory_space<semaphore_mem>> -> memref<!tpu.dma_semaphore, #tpu.memory_space<semaphore_mem>>
    tpu.enqueue_dma source(%arg2 : memref<8x128xf32, #tpu.memory_space<any>>) target(%6 : memref<8x128xf32, #tpu.memory_space<any>>) target_semaphore(%8 : memref<!tpu.dma_semaphore, #tpu.memory_space<semaphore_mem>>)
    %c0_i32_4 = arith.constant 0 : i32
    %c0_i32_5 = arith.constant 0 : i32
    %c0_i32_6 = arith.constant 0 : i32
    %9 = tpu.memref_slice %arg3[%c0_i32_5, %c0_i32_6] : memref<8x512xf32, #tpu.memory_space<any>> -> memref<8x128xf32, #tpu.memory_space<any>>
    %10 = tpu.memref_slice %arg4[%c0_i32_4] : memref<3x!tpu.dma_semaphore, #tpu.memory_space<semaphore_mem>> -> memref<1x!tpu.dma_semaphore, #tpu.memory_space<semaphore_mem>>
    %11 = tpu.memref_squeeze %10 : memref<1x!tpu.dma_semaphore, #tpu.memory_space<semaphore_mem>> -> memref<!tpu.dma_semaphore, #tpu.memory_space<semaphore_mem>>
    tpu.wait_dma2 semaphore(%11 : memref<!tpu.dma_semaphore, #tpu.memory_space<semaphore_mem>>) src(%arg0 : memref<8x128xf32, #tpu.memory_space<any>>) dst(%9 : memref<8x128xf32, #tpu.memory_space<any>>)
    %c1_i32_7 = arith.constant 1 : i32
    %c0_i32_8 = arith.constant 0 : i32
    %c128_i32_9 = arith.constant 128 : i32
    %12 = tpu.memref_slice %arg3[%c0_i32_8, %c128_i32_9] : memref<8x512xf32, #tpu.memory_space<any>> -> memref<8x256xf32, #tpu.memory_space<any>>
    %13 = tpu.memref_slice %arg4[%c1_i32_7] : memref<3x!tpu.dma_semaphore, #tpu.memory_space<semaphore_mem>> -> memref<1x!tpu.dma_semaphore, #tpu.memory_space<semaphore_mem>>
    %14 = tpu.memref_squeeze %13 : memref<1x!tpu.dma_semaphore, #tpu.memory_space<semaphore_mem>> -> memref<!tpu.dma_semaphore, #tpu.memory_space<semaphore_mem>>
    tpu.wait_dma2 semaphore(%14 : memref<!tpu.dma_semaphore, #tpu.memory_space<semaphore_mem>>) src(%arg1 : memref<8x256xf32, #tpu.memory_space<any>>) dst(%12 : memref<8x256xf32, #tpu.memory_space<any>>)
    %c2_i32_10 = arith.constant 2 : i32
    %c0_i32_11 = arith.constant 0 : i32
    %c384_i32_12 = arith.constant 384 : i32
    %15 = tpu.memref_slice %arg3[%c0_i32_11, %c384_i32_12] : memref<8x512xf32, #tpu.memory_space<any>> -> memref<8x128xf32, #tpu.memory_space<any>>
    %16 = tpu.memref_slice %arg4[%c2_i32_10] : memref<3x!tpu.dma_semaphore, #tpu.memory_space<semaphore_mem>> -> memref<1x!tpu.dma_semaphore, #tpu.memory_space<semaphore_mem>>
    %17 = tpu.memref_squeeze %16 : memref<1x!tpu.dma_semaphore, #tpu.memory_space<semaphore_mem>> -> memref<!tpu.dma_semaphore, #tpu.memory_space<semaphore_mem>>
    tpu.wait_dma2 semaphore(%17 : memref<!tpu.dma_semaphore, #tpu.memory_space<semaphore_mem>>) src(%arg2 : memref<8x128xf32, #tpu.memory_space<any>>) dst(%15 : memref<8x128xf32, #tpu.memory_space<any>>)
    return
  }
}

</mosaic_0001>

<llo_original>
// kernel: tpu_custom_call.1
$region0: #{tpu_custom_call.1}
  #allocation0 [shape = 'u32[]', space=smem, size = 0x4, offset = 0x4, fixed_abs, tag = 'smem constant byte address 0x4 - core index']
  #allocation1 [shape = 'u32[144,128]{1,0:T(1,128)}', space=vmem, size = 0x12000, scoped, tag = 'internal scratch']
  #allocation2 [shape = 's32[3]{0}', space=sflag, size = 0xc, scoped, tag = 'scratch operand']
  #allocation3 [shape = 's32[]', space=sflag, size = 0x4, offset = 0, fixed_abs, tag = 'sflag constant byte address 0x0 - dummy sync flag']
  #allocation4 [shape = 'u32[0]{0}', space=smem, size = 0, offset = 0, fixed_abs, tag = 'smem constant byte address 0x0 - null']
  #allocation5 [shape = 's32[]', space=sflag, size = 0x4, offset = 0, fixed_abs, tag = 'sflag constant byte address 0x0 - dummy sync flag']
  #allocation6 [shape = 'u32[0]{0}', space=smem, size = 0, offset = 0, fixed_abs, tag = 'smem constant byte address 0x0 - null']
  #allocation7 [shape = 's32[]', space=sflag, size = 0x4, offset = 0, fixed_abs, tag = 'sflag constant byte address 0x0 - dummy sync flag']
  #allocation8 [shape = 'u32[0]{0}', space=smem, size = 0, offset = 0, fixed_abs, tag = 'smem constant byte address 0x0 - null']
  %s0 = inlined_call_operand.hbm [shape: f32[8,128], index: 0, kind: input, shape index: {}]
  %s1 = inlined_call_operand.hbm [shape: f32[8,256], index: 1, kind: input, shape index: {}]
  %s2 = inlined_call_operand.hbm [shape: f32[8,128], index: 2, kind: input, shape index: {}]
  %s3 = inlined_call_operand.hbm [shape: f32[8,512], index: 3, kind: output, shape index: {}]
  %s4 = sld [smem:[#allocation0]]
  $region2: #{tpu_custom_call.1} parent=0
    _
  %s6 = ssub.s32 1, %s4
  %s7 = scalar_select 0, %s6, %s4
  %s9 = sshll.u32 1, 14
  %s10 = sxor.u32 4294967295, %s9
  %14 = dma.general %s0, 128, %s3, [#allocation2], 131072, [#allocation4], 0, 0
  %s15 = scalar_lea.hbm %s3, 128
  %s16 = scalar_lea.sflag [#allocation2], 1
  %s18 = sshll.u32 1, 14
  %s19 = sxor.u32 4294967295, %s18
  %23 = dma.general %s1, 256, %s15, %s16, 131072, [#allocation6], 0, 0
  %s24 = scalar_lea.hbm %s3, 384
  %s25 = scalar_lea.sflag [#allocation2], 2
  %s27 = sshll.u32 1, 14
  %s28 = sxor.u32 4294967295, %s27
  %32 = dma.general %s2, 128, %s24, %s25, 131072, [#allocation8], 0, 0
  %s33 = smul.u32 8, 1
  %s34 = smul.u32 %s33, 1
  %s35 = sshll.u32 %s34, 4
  %36 = dma.done [#allocation2], %s35
  %s37 = smul.u32 %s33, 2
  %s38 = sshll.u32 %s37, 4
  %39 = dma.done %s16, %s38
  %s40 = sshll.u32 %s34, 4
  %41 = dma.done %s25, %s40
  %42 = vsyncmov [#allocation2]
  %s43 = vpop.sfrf %42
  %p44 = scmp.eq.s32.totalorder %s43, 0
  %p45 = pneg %p44
  %47 = shalt.err (%p45)
  %s48 = scalar_lea.sflag [#allocation2], 1
  %49 = vsyncmov %s48
  %s50 = vpop.sfrf %49
  %p51 = scmp.eq.s32.totalorder %s50, 0
  %p52 = pneg %p51
  %54 = shalt.err (%p52)
  %s55 = scalar_lea.sflag [#allocation2], 2
  %56 = vsyncmov %s55
  %s57 = vpop.sfrf %56
  %p58 = scmp.eq.s32.totalorder %s57, 0
  %p59 = pneg %p58
  %61 = shalt.err (%p59)

</llo_original>
